<compile_context>
chip_gen: v7x
topology: tpu7x:2x2x1
jax: 0.10.0
libtpu: 0.0.40
codegen_flags: <defaults>
</compile_context>

<pallas_src>
import jax
import jax.numpy as jnp
from jax.experimental import pallas as pl
from jax.experimental.pallas import tpu as pltpu

# Static problem sizes implied by the module: fc expects 16*3 = 48 features,
# so pooled length = 3, conv length = 6, input length = 6 + 5 - 1 = 10.
B, C_IN, L_IN = 2, 4, 10
C_OUT, K = 16, 5
L_CONV = L_IN - K + 1               # 6
L_POOL = L_CONV // 2                # 3  (MaxPool1d(2), floor)
FC_IN, FC_OUT = C_OUT * L_POOL, 2   # 48, 2

X_AUG = L_IN * C_IN + 1             # 41  (flattened input + ones column)
Y_AUG = L_CONV * C_OUT + 1          # 97  (conv output + constant-one column)
P_AUG = FC_IN + 1                   # 49  (pooled features + constant-one column)


def simple_cnn_kernel(x_ref, wc_ref, wf_ref, out_ref):
    x = x_ref[...]          # (B, X_AUG)   = (2, 41)  input slab + ones column
    wc = wc_ref[...]        # (X_AUG, Y_AUG) = (41, 97) banded conv weight (+bias row, +ones col)
    wf = wf_ref[...]        # (P_AUG, FC_OUT) = (49, 2) permuted fc weight (+bias row)

    # ---- Conv1d (valid) + bias as ONE MXU matmul; ReLU on the VPU.
    # Column index of y is l_conv*C_OUT + c_out; column 96 is the constant 1.0
    # (zero weights, bias 1.0) which survives ReLU and carries the fc bias.
    y = jnp.dot(x, wc, preferred_element_type=jnp.float32)      # (B, 97)
    y = jnp.maximum(y, 0.0)

    # ---- MaxPool1d(2) fused with flatten: pairwise max of adjacent 16-lane
    # column blocks (positions 2*lp and 2*lp+1).  3 full-width VPU maxes.
    parts = [
        jnp.maximum(y[:, (2 * lp) * C_OUT:(2 * lp + 1) * C_OUT],
                    y[:, (2 * lp + 1) * C_OUT:(2 * lp + 2) * C_OUT])
        for lp in range(L_POOL)
    ]
    parts.append(y[:, L_CONV * C_OUT:L_CONV * C_OUT + 1])        # ones column
    pooled = jnp.concatenate(parts, axis=-1)                     # (B, 49)

    # ---- Linear(48 -> 2) + bias as ONE matmul (bias row keyed by ones column).
    out = jnp.dot(pooled, wf, preferred_element_type=jnp.float32)  # (B, 2)
    out_ref[...] = out.astype(out_ref.dtype)


def simple_cnn_forward(x, conv_w, conv_b, fc_w, fc_b):
    f32 = jnp.float32

    # ---- Activations: channels-last flatten (index p*C_IN + c), plus ones col.
    x_flat = jnp.transpose(x, (0, 2, 1)).reshape(B, L_IN * C_IN)         # (2, 40)
    x_aug = jnp.concatenate([x_flat, jnp.ones((B, 1), f32)], axis=-1)    # (2, 41)

    # ---- Banded (Toeplitz) conv weight: W[p*C_IN + ci, l*C_OUT + co]
    #      = conv_w[co, ci, p - l] for l <= p < l + K, else 0.
    w_kcC = jnp.transpose(conv_w, (2, 1, 0))                              # (K, C_IN, C_OUT)
    banded = jnp.zeros((L_IN, C_IN, L_CONV, C_OUT), f32)
    for l in range(L_CONV):
        banded = banded.at[l:l + K, :, l, :].set(w_kcC)
    wc = banded.reshape(L_IN * C_IN, L_CONV * C_OUT)                      # (40, 96)
    bc_row = jnp.tile(conv_b, (L_CONV,))[None, :]                         # (1, 96)
    wc = jnp.concatenate([wc, bc_row], axis=0)                            # (41, 96)
    # Extra output column: zero weights, bias 1.0 -> constant-one feature.
    ones_col = jnp.zeros((X_AUG, 1), f32).at[-1, 0].set(1.0)
    wc_aug = jnp.concatenate([wc, ones_col], axis=-1)                     # (41, 97)

    # ---- fc weight permuted from torch order (c*L_POOL + lp) to pooled order
    #      (lp*C_OUT + c), with the fc bias appended as the last row.
    wf = jnp.transpose(fc_w.reshape(FC_OUT, C_OUT, L_POOL),
                       (2, 1, 0)).reshape(FC_IN, FC_OUT)                  # (48, 2)
    wf_aug = jnp.concatenate([wf, fc_b[None, :]], axis=0)                 # (49, 2)

    vmem = pltpu.MemorySpace.VMEM
    return pl.pallas_call(
        simple_cnn_kernel,
        out_shape=jax.ShapeDtypeStruct((B, FC_OUT), jnp.float32),
        in_specs=[pl.BlockSpec(memory_space=vmem)] * 3,
        out_specs=pl.BlockSpec(memory_space=vmem),
    )(x_aug, wc_aug, wf_aug)


def reference_forward(x, conv_w, conv_b, fc_w, fc_b):
    # Pure-JAX reference mirroring the PyTorch forward (NCL layout), for validation.
    cols = jnp.stack([x[:, :, k:k + L_CONV] for k in range(K)], axis=-1)  # (B,C_IN,L_CONV,K)
    conv = jnp.einsum("bclk,ock->bol", cols, conv_w) + conv_b[None, :, None]
    relu = jnp.maximum(conv, 0.0)
    pooled = jnp.max(relu.reshape(B, C_OUT, L_POOL, 2), axis=-1)
    flat = pooled.reshape(B, FC_IN)          # feature index = c*L_POOL + lp (torch .view)
    return flat @ fc_w.T + fc_b[None, :]


if __name__ == "__main__":
    key = jax.random.PRNGKey(0)
    kx, k1, k2, k3, k4 = jax.random.split(key, 5)

    x = jax.random.normal(kx, (B, C_IN, L_IN), dtype=jnp.float32)

    # Deterministic parameter init (PyTorch-like uniform(+-1/sqrt(fan_in))).
    conv_bound = 1.0 / jnp.sqrt(C_IN * K)
    fc_bound = 1.0 / jnp.sqrt(FC_IN)
    conv_w = jax.random.uniform(k1, (C_OUT, C_IN, K), jnp.float32,
                                -conv_bound, conv_bound)
    conv_b = jax.random.uniform(k2, (C_OUT,), jnp.float32,
                                -conv_bound, conv_bound)
    fc_w = jax.random.uniform(k3, (FC_OUT, FC_IN), jnp.float32,
                              -fc_bound, fc_bound)
    fc_b = jax.random.uniform(k4, (FC_OUT,), jnp.float32,
                              -fc_bound, fc_bound)

    out = simple_cnn_forward(x, conv_w, conv_b, fc_w, fc_b)
    out = jax.block_until_ready(out)

    ref = reference_forward(x, conv_w, conv_b, fc_w, fc_b)
    assert out.shape == (B, FC_OUT)
    assert jnp.allclose(out, ref, atol=1e-4, rtol=1e-4), (out, ref)

    print("KERNEL_OK")
</pallas_src>

<mosaic_0001>
module attributes {stable_mosaic.version = 11 : i64} {
  func.func @simple_cnn_kernel(%arg0: memref<2x41xf32, #tpu.memory_space<vmem>>, %arg1: memref<41x97xf32, #tpu.memory_space<vmem>>, %arg2: memref<49x2xf32, #tpu.memory_space<vmem>>, %arg3: memref<2x2xf32, #tpu.memory_space<vmem>>) attributes {dimension_semantics = [], scalar_prefetch = 0 : i64, scratch_operands = 0 : i64, tpu.core_type = #tpu.core_type<tc>} {
    %c0 = arith.constant 0 : index
    %c0_0 = arith.constant 0 : index
    %0 = vector.load %arg0[%c0, %c0_0] : memref<2x41xf32, #tpu.memory_space<vmem>>, vector<2x41xf32>
    %c0_1 = arith.constant 0 : index
    %c0_2 = arith.constant 0 : index
    %1 = vector.load %arg1[%c0_1, %c0_2] : memref<41x97xf32, #tpu.memory_space<vmem>>, vector<41x97xf32>
    %c0_3 = arith.constant 0 : index
    %c0_4 = arith.constant 0 : index
    %2 = vector.load %arg2[%c0_3, %c0_4] : memref<49x2xf32, #tpu.memory_space<vmem>>, vector<49x2xf32>
    %cst = arith.constant dense<0.000000e+00> : vector<2x97xf32>
    %3 = tpu.matmul %0, %1, %cst {dimension_numbers = #tpu.dot_dimension_numbers<[1], [0], [0], [1], [0, 0, 1, 1], [], []>} : vector<2x41xf32>, vector<41x97xf32>, vector<2x97xf32> -> vector<2x97xf32>
    %cst_5 = arith.constant 0.000000e+00 : f32
    %4 = vector.broadcast %cst_5 : f32 to vector<2x97xf32>
    %5 = arith.maximumf %3, %4 : vector<2x97xf32>
    %6 = vector.extract_strided_slice %5 {offsets = [0, 0], sizes = [2, 16], strides = [1, 1]} : vector<2x97xf32> to vector<2x16xf32>
    %7 = vector.extract_strided_slice %5 {offsets = [0, 16], sizes = [2, 16], strides = [1, 1]} : vector<2x97xf32> to vector<2x16xf32>
    %8 = arith.maximumf %6, %7 : vector<2x16xf32>
    %9 = vector.extract_strided_slice %5 {offsets = [0, 32], sizes = [2, 16], strides = [1, 1]} : vector<2x97xf32> to vector<2x16xf32>
    %10 = vector.extract_strided_slice %5 {offsets = [0, 48], sizes = [2, 16], strides = [1, 1]} : vector<2x97xf32> to vector<2x16xf32>
    %11 = arith.maximumf %9, %10 : vector<2x16xf32>
    %12 = vector.extract_strided_slice %5 {offsets = [0, 64], sizes = [2, 16], strides = [1, 1]} : vector<2x97xf32> to vector<2x16xf32>
    %13 = vector.extract_strided_slice %5 {offsets = [0, 80], sizes = [2, 16], strides = [1, 1]} : vector<2x97xf32> to vector<2x16xf32>
    %14 = arith.maximumf %12, %13 : vector<2x16xf32>
    %15 = vector.extract_strided_slice %5 {offsets = [0, 96], sizes = [2, 1], strides = [1, 1]} : vector<2x97xf32> to vector<2x1xf32>
    %16 = tpu.concatenate %8, %11, %14, %15 in 1 : vector<2x16xf32>, vector<2x16xf32>, vector<2x16xf32>, vector<2x1xf32> -> vector<2x49xf32>
    %cst_6 = arith.constant dense<0.000000e+00> : vector<2x2xf32>
    %17 = tpu.matmul %16, %2, %cst_6 {dimension_numbers = #tpu.dot_dimension_numbers<[1], [0], [0], [1], [0, 0, 1, 1], [], []>} : vector<2x49xf32>, vector<49x2xf32>, vector<2x2xf32> -> vector<2x2xf32>
    %c0_7 = arith.constant 0 : index
    %c0_8 = arith.constant 0 : index
    %18 = vector.load %arg3[%c0_7, %c0_8] : memref<2x2xf32, #tpu.memory_space<vmem>>, vector<2x2xf32>
    tpu.vector_store %arg3[%c0_7, %c0_8], %17 {strides = array<i32>} : memref<2x2xf32, #tpu.memory_space<vmem>>, vector<2x2xf32>,
    return
  }
}

</mosaic_0001>

<llo_original>
// kernel: tpu_custom_call.1
$region0: #{tpu_custom_call.1}
  #allocation0 [shape = 'u32[]', space=smem, size = 0x4, offset = 0x4, fixed_abs, tag = 'smem constant byte address 0x4 - core index']
  #allocation1 [shape = 'u32[144,128]{1,0:T(1,128)}', space=vmem, size = 0x12000, scoped, tag = 'internal scratch']
  %s0 = inlined_call_operand.vmem [shape: f32[2,41], index: 0, kind: input, shape index: {}]
  %s1 = inlined_call_operand.vmem [shape: f32[41,97], index: 1, kind: input, shape index: {}]
  %s2 = inlined_call_operand.vmem [shape: f32[49,2], index: 2, kind: input, shape index: {}]
  %s3 = inlined_call_operand.hbm [shape: f32[2,2], index: 3, kind: output, shape index: {}]
  %s4 = sld [smem:[#allocation0]]
  $region22: #{tpu_custom_call.1} parent=0
    _
  %s6 = ssub.s32 1, %s4
  %s7 = scalar_select 0, %s6, %s4
  $region1: #{tpu_custom_call.1} parent=0
    #allocation2 [shape = 'u8[1024]{0}', space=vmem, size = 0x400, scoped, tag = 'output window, operand 0, single buffered']
    #allocation3 [shape = 's32[1]{0}', space=sflag, size = 0x4, scoped, tag = 'scoped memory for tpu_custom_call.1']
    %8 = vsyncpa [#allocation3], 0
    // Predicated region
    $region2: #{tpu_custom_call.1} parent=1 // pred_check
      _
    $region3: #{tpu_custom_call.1} parent=1 // pred_check_branch
      %10 = sbr.rel (0) target = $region5
    $region4: #{tpu_custom_call.1} parent=1 // pred_region
      _
    $region5: #{tpu_custom_call.1} parent=1 // pred_fallthru
      _
    // Predicated region
    $region6: #{tpu_custom_call.1} parent=1 // pred_check
      _
    $region7: #{tpu_custom_call.1} parent=1 // pred_check_branch
      %12 = sbr.rel (0) target = $region9
    $region8: #{tpu_custom_call.1} parent=1 // pred_region
      _
    $region9: #{tpu_custom_call.1} parent=1 // pred_fallthru
      _
    // Predicated region
    $region10: #{tpu_custom_call.1} parent=1 // pred_check
      _
    $region11: #{tpu_custom_call.1} parent=1 // pred_check_branch
      %14 = sbr.rel (0) target = $region13
    $region12: #{tpu_custom_call.1} parent=1 // pred_region
      _
    $region13: #{tpu_custom_call.1} parent=1 // pred_fallthru
      _
    %v15 = vld [vmem:[%s0] sm:$0x3]
    %v16 = vld [vmem:[%s1] sm:$0xff]
    %v17 = vld [vmem:[%s1 + $0x8] sm:$0xff]
    %v18 = vld [vmem:[%s1 + $0x10] sm:$0xff]
    %v19 = vld [vmem:[%s1 + $0x18] sm:$0xff]
    %v20 = vld [vmem:[%s1 + $0x20] sm:$0xff]
    %v21 = vld [vmem:[%s1 + $0x28] sm:$0x1]
    %v22 = vld [vmem:[%s2] sm:$0xff]
    %v23 = vld [vmem:[%s2 + $0x8] sm:$0xff]
    %v24 = vld [vmem:[%s2 + $0x10] sm:$0xff]
    %v25 = vld [vmem:[%s2 + $0x18] sm:$0xff]
    %v26 = vld [vmem:[%s2 + $0x20] sm:$0xff]
    %v27 = vld [vmem:[%s2 + $0x28] sm:$0xff]
    %v28 = vld [vmem:[%s2 + $0x30] sm:$0x1]
    %vm29 = vcmask 334848
    %v31 = vsel %vm29, %v15, 0
    %vm33 = vcmask 1040384
    %v35 = vsel %vm33, %v21, 0
    %37 = vmatprep.subr.mxu0 0.0
    %38 = vmatpush1.msra.mxu0 %v16
    %39 = vmatprep.subr.mxu0 0.0
    %40 = vmatpush1.msra.mxu0 %v17
    %41 = vmatprep.subr.mxu0 0.0
    %42 = vmatpush1.msra.mxu0 %v18
    %43 = vmatprep.subr.mxu0 0.0
    %44 = vmatpush1.msra.mxu0 %v19
    %45 = vmatprep.subr.mxu0 0.0
    %46 = vmatpush1.msra.mxu0 %v20
    %47 = vmatprep.subr.mxu0 0.0
    %48 = vmatpush1.msra.mxu0 %v35
    %49 = vmatprep.subr.mxu0 0.0
    %50 = vmatpush1.msra.mxu0 0.0
    %51 = vmatprep.subr.mxu0 0.0
    %52 = vmatpush1.msra.mxu0 0.0
    %53 = vmatprep.subr.mxu0 0.0
    %54 = vmatpush1.msra.mxu0 0.0
    %55 = vmatprep.subr.mxu0 0.0
    %56 = vmatpush1.msra.mxu0 0.0
    %57 = vmatprep.subr.mxu0 0.0
    %58 = vmatpush1.msra.mxu0 0.0
    %59 = vmatprep.subr.mxu0 0.0
    %60 = vmatpush1.msra.mxu0 0.0
    %61 = vmatprep.subr.mxu0 0.0
    %62 = vmatpush1.msra.mxu0 0.0
    %63 = vmatprep.subr.mxu0 0.0
    %64 = vmatpush1.msra.mxu0 0.0
    %65 = vmatprep.subr.mxu0 0.0
    %66 = vmatpush1.msra.mxu0 0.0
    %67 = vmatprep.subr.mxu0 0.0
    %68 = vmatpush1.msra.mxu0 0.0
    %69 = vmatprep.subr.mxu0 0.0
    %70 = vmatpush1.msra.mxu0 0.0
    %71 = vmatprep.subr.mxu0 0.0
    %72 = vmatpush1.msra.mxu0 0.0
    %73 = vmatprep.subr.mxu0 0.0
    %74 = vmatpush1.msra.mxu0 0.0
    %75 = vmatprep.subr.mxu0 0.0
    %76 = vmatpush1.msra.mxu0 0.0
    %77 = vmatprep.subr.mxu0 0.0
    %78 = vmatpush1.msra.mxu0 0.0
    %79 = vmatprep.subr.mxu0 0.0
    %80 = vmatpush1.msra.mxu0 0.0
    %81 = vmatprep.subr.mxu0 0.0
    %82 = vmatpush1.msra.mxu0 0.0
    %83 = vmatprep.subr.mxu0 0.0
    %84 = vmatpush1.msra.mxu0 0.0
    %85 = vmatprep.subr.mxu0 0.0
    %86 = vmatpush1.msra.mxu0 0.0
    %87 = vmatprep.subr.mxu0 0.0
    %88 = vmatpush1.msra.mxu0 0.0
    %89 = vmatprep.subr.mxu0 0.0
    %90 = vmatpush1.msra.mxu0 0.0
    %91 = vmatprep.subr.mxu0 0.0
    %92 = vmatpush1.msra.mxu0 0.0
    %93 = vmatprep.subr.mxu0 0.0
    %94 = vmatpush1.msra.mxu0 0.0
    %95 = vmatprep.subr.mxu0 0.0
    %96 = vmatpush1.msra.mxu0 0.0
    %97 = vmatprep.subr.mxu0 0.0
    %98 = vmatpush1.msra.mxu0 0.0
    %99 = vmatprep.subr.mxu0 0.0
    %100 = vmatpush1.msra.mxu0 0.0
    %101 = vmatprep.mubr.f32.mxu0 0.0
    %102 = vmatmul.mubr.f32.gmra.mrb[0].mxu0 %v31
    %v103 = vpop.f32.mrb[0].mxu0
    %v104 = vadd.f32 0.0, %v103
    %v105 = vpop.f32.mrb[0].mxu0
    %106 = vdwg.mxu0
    %v107 = vmax.f32 %v104, 0.0
    %109 = vrot.lane.b32.xlu0 %v107, 112
    %v110 = vpop.permute.xlu0 %109
    %v112 = vmax.f32 %v107, %v110
    %114 = vrot.lane.b32.xlu0 %v112, 112
    %v115 = vpop.permute.xlu0 %114
    %117 = vrot.lane.b32.xlu0 %v112, 96
    %v118 = vpop.permute.xlu0 %117
    %120 = vrot.lane.b32.xlu0 %v107, 80
    %v121 = vpop.permute.xlu0 %120
    %vm123 = vcmask 130048
    %v124 = vsel %vm123, %v112, %v115
    %vm125 = vcmask 261120
    %v126 = vsel %vm125, %v124, %v118
    %vm127 = vcmask 392192
    %v128 = vsel %vm127, %v126, %v121
    %vm129 = vcmask 400384
    %v131 = vsel %vm129, %v128, 0
    %v134 = vsel %vm33, %v28, 0
    %136 = vmatprep.subr.mxu0 0.0
    %137 = vmatpush1.msra.mxu0 %v22
    %138 = vmatprep.subr.mxu0 0.0
    %139 = vmatpush1.msra.mxu0 %v23
    %140 = vmatprep.subr.mxu0 0.0
    %141 = vmatpush1.msra.mxu0 %v24
    %142 = vmatprep.subr.mxu0 0.0
    %143 = vmatpush1.msra.mxu0 %v25
    %144 = vmatprep.subr.mxu0 0.0
    %145 = vmatpush1.msra.mxu0 %v26
    %146 = vmatprep.subr.mxu0 0.0
    %147 = vmatpush1.msra.mxu0 %v27
    %148 = vmatprep.subr.mxu0 0.0
    %149 = vmatpush1.msra.mxu0 %v134
    %150 = vmatprep.subr.mxu0 0.0
    %151 = vmatpush1.msra.mxu0 0.0
    %152 = vmatprep.subr.mxu0 0.0
    %153 = vmatpush1.msra.mxu0 0.0
    %154 = vmatprep.subr.mxu0 0.0
    %155 = vmatpush1.msra.mxu0 0.0
    %156 = vmatprep.subr.mxu0 0.0
    %157 = vmatpush1.msra.mxu0 0.0
    %158 = vmatprep.subr.mxu0 0.0
    %159 = vmatpush1.msra.mxu0 0.0
    %160 = vmatprep.subr.mxu0 0.0
    %161 = vmatpush1.msra.mxu0 0.0
    %162 = vmatprep.subr.mxu0 0.0
    %163 = vmatpush1.msra.mxu0 0.0
    %164 = vmatprep.subr.mxu0 0.0
    %165 = vmatpush1.msra.mxu0 0.0
    %166 = vmatprep.subr.mxu0 0.0
    %167 = vmatpush1.msra.mxu0 0.0
    %168 = vmatprep.subr.mxu0 0.0
    %169 = vmatpush1.msra.mxu0 0.0
    %170 = vmatprep.subr.mxu0 0.0
    %171 = vmatpush1.msra.mxu0 0.0
    %172 = vmatprep.subr.mxu0 0.0
    %173 = vmatpush1.msra.mxu0 0.0
    %174 = vmatprep.subr.mxu0 0.0
    %175 = vmatpush1.msra.mxu0 0.0
    %176 = vmatprep.subr.mxu0 0.0
    %177 = vmatpush1.msra.mxu0 0.0
    %178 = vmatprep.subr.mxu0 0.0
    %179 = vmatpush1.msra.mxu0 0.0
    %180 = vmatprep.subr.mxu0 0.0
    %181 = vmatpush1.msra.mxu0 0.0
    %182 = vmatprep.subr.mxu0 0.0
    %183 = vmatpush1.msra.mxu0 0.0
    %184 = vmatprep.subr.mxu0 0.0
    %185 = vmatpush1.msra.mxu0 0.0
    %186 = vmatprep.subr.mxu0 0.0
    %187 = vmatpush1.msra.mxu0 0.0
    %188 = vmatprep.subr.mxu0 0.0
    %189 = vmatpush1.msra.mxu0 0.0
    %190 = vmatprep.subr.mxu0 0.0
    %191 = vmatpush1.msra.mxu0 0.0
    %192 = vmatprep.subr.mxu0 0.0
    %193 = vmatpush1.msra.mxu0 0.0
    %194 = vmatprep.subr.mxu0 0.0
    %195 = vmatpush1.msra.mxu0 0.0
    %196 = vmatprep.subr.mxu0 0.0
    %197 = vmatpush1.msra.mxu0 0.0
    %198 = vmatprep.subr.mxu0 0.0
    %199 = vmatpush1.msra.mxu0 0.0
    %200 = vmatprep.mubr.f32.mxu0 0.0
    %201 = vmatmul.mubr.f32.gmra.mrb[0].mxu0 %v131
    %v202 = vpop.f32.mrb[0].mxu0
    %v203 = vadd.f32 0.0, %v202
    %v204 = vpop.f32.mrb[0].mxu0
    %205 = vdwg.mxu0
    %vm206 = vcmask 9216
    %207 = vst.msk [vmem:[#allocation2] sm:$0x3] %vm206, %v203
    // Predicated region
    $region14: #{tpu_custom_call.1} parent=1 // pred_check
      _
    $region15: #{tpu_custom_call.1} parent=1 // pred_check_branch
      %209 = sbr.rel (0) target = $region17
    $region16: #{tpu_custom_call.1} parent=1 // pred_region
      %s211 = ssub.s32 32, 32
      %212 = vsyncadd [#allocation3], %s211
      %s214 = sshll.u32 [#allocation2], 4
      %s215 = int_to_ptr.vmem [resolvable:$true] %s214
      %217 = dma.vmem_to_hbm [thread:$0]  %s215, 32, %s3, [#allocation3]
    $region17: #{tpu_custom_call.1} parent=1 // pred_fallthru
      _
    // Predicated region
    $region18: #{tpu_custom_call.1} parent=1 // pred_check
      _
    $region19: #{tpu_custom_call.1} parent=1 // pred_check_branch
      %219 = sbr.rel (0) target = $region21
    $region20: #{tpu_custom_call.1} parent=1 // pred_region
      %220 = dma.done [#allocation3], 32
    $region21: #{tpu_custom_call.1} parent=1 // pred_fallthru
      _
    %221 = vsyncpa [#allocation3], 1

</llo_original>
